<compile_context>
chip_gen: v5e
topology: v5e:2x2
jax: 0.10.0
libtpu: 0.0.40
codegen_flags: <defaults>
</compile_context>

<pallas_src>
import functools

import numpy as np
import jax
import jax.numpy as jnp
from jax import lax
from jax.experimental import pallas as pl
from jax.experimental.pallas import tpu as pltpu


def _round_up(x, m):
    return ((x + m - 1) // m) * m


def _grid_bp_kernel(min_ref, npot_ref, d_ref, u_ref, r_ref, l_ref,
                    minf_ref, do_ref, uo_ref, ro_ref, lo_ref, mout_ref,
                    *, stay, alpha, h, w, num_iters):
    dt = min_ref.dtype
    n0, n1 = npot_ref[0], npot_ref[1]
    x0, x1 = min_ref[0], min_ref[1]

    # ----- Min fix-up where npot . Min == 0 (torch mutates Min in place) -----
    zero = (n0 * x0 + n1 * x1) == 0.0
    x0 = jnp.where(zero, 0.5, x0)
    x1 = jnp.where(zero, 0.5, x1)
    minf_ref[0] = x0
    minf_ref[1] = x1

    # node potential * evidence, shared by every message update
    p0 = n0 * x0
    p1 = n1 * x1

    hp, wp = p0.shape
    row = lax.broadcasted_iota(jnp.int32, (hp, wp), 0)
    col = lax.broadcasted_iota(jnp.int32, (hp, wp), 1)
    top = row == 0          # identity border of D
    bot = row == h - 1      # identity border of U
    left = col == 0         # identity border of R
    right = col == w - 1    # identity border of L

    one_row = jnp.ones((1, wp), dt)
    one_col = jnp.ones((hp, 1), dt)

    # Shift the per-source-cell product to the destination cell of the
    # message.  The shifted-in border is overwritten by the masks below.
    # (Kept as concat-of-slices for guaranteed lowering; an XLU pltpu.roll
    # plus the same border mask is a further optimization.)
    def shift_down(a):    # dest row i <- src row i-1
        return jnp.concatenate([one_row, a[:-1, :]], axis=0)

    def shift_up(a):      # dest row i <- src row i+1
        return jnp.concatenate([a[1:, :], one_row], axis=0)

    def shift_right(a):   # dest col j <- src col j-1
        return jnp.concatenate([one_col, a[:, :-1]], axis=1)

    def shift_left(a):    # dest col j <- src col j+1
        return jnp.concatenate([a[:, 1:], one_col], axis=1)

    def epot_apply(a0, a1):
        # symmetric pairwise potential [[stay, 1-stay], [1-stay, stay]]
        # (epot == epot.T, so the same form serves Md/Mr and Mu/Ml updates)
        return stay * a0 + (1.0 - stay) * a1, (1.0 - stay) * a0 + stay * a1

    def update(s0, s1, shift, mask, old0, old1):
        # shift source products to destination, apply epot, normalize with a
        # single divide (alpha folded in), damp with the old message and pin
        # the identity border back to 1.
        t0, t1 = shift(s0), shift(s1)
        e0, e1 = epot_apply(t0, t1)
        inv = alpha / (e0 + e1)
        new0 = e0 * inv + (1.0 - alpha) * old0
        new1 = e1 * inv + (1.0 - alpha) * old1
        return jnp.where(mask, 1.0, new0), jnp.where(mask, 1.0, new1)

    def sweep(msgs):
        d0, d1, u0, u1, r0, r1, l0, l1 = msgs
        # factored shared sub-products (~8 full-size multiplies per channel)
        a0 = p0 * (r0 * l0)      # everything except the vertical messages
        a1 = p1 * (r1 * l1)
        b0 = p0 * (u0 * d0)      # everything except the horizontal messages
        b1 = p1 * (u1 * d1)
        nd0, nd1 = update(a0 * d0, a1 * d1, shift_down, top, d0, d1)
        nu0, nu1 = update(a0 * u0, a1 * u1, shift_up, bot, u0, u1)
        nr0, nr1 = update(b0 * r0, b1 * r1, shift_right, left, r0, r1)
        nl0, nl1 = update(b0 * l0, b1 * l1, shift_left, right, l0, l1)
        return nd0, nd1, nu0, nu1, nr0, nr1, nl0, nl1

    msgs = (d_ref[0], d_ref[1], u_ref[0], u_ref[1],
            r_ref[0], r_ref[1], l_ref[0], l_ref[1])
    if num_iters <= 4:
        for _ in range(num_iters):
            msgs = sweep(msgs)
    else:
        msgs = lax.fori_loop(0, num_iters, lambda _, m: sweep(m), msgs)
    d0, d1, u0, u1, r0, r1, l0, l1 = msgs

    do_ref[0], do_ref[1] = d0, d1
    uo_ref[0], uo_ref[1] = u0, u1
    ro_ref[0], ro_ref[1] = r0, r1
    lo_ref[0], lo_ref[1] = l0, l1

    # ----- beliefs Mout -----
    o0 = (d0 * u0) * (r0 * l0)
    o1 = (d1 * u1) * (r1 * l1)
    inv = 1.0 / (o0 + o1)
    mout_ref[0] = o0 * inv
    mout_ref[1] = o1 * inv


def _pallas_grid_bp(min_p, npot_p, d_p, u_p, r_p, l_p, *, stay, alpha,
                    h, w, num_iters):
    """Run the kernel on padded channel-first (2, Hp, Wp) state."""
    _, hp, wp = min_p.shape
    dtype = min_p.dtype
    kernel = functools.partial(_grid_bp_kernel, stay=float(stay),
                               alpha=float(alpha), h=int(h), w=int(w),
                               num_iters=int(num_iters))
    out_shape = tuple(jax.ShapeDtypeStruct((2, hp, wp), dtype)
                      for _ in range(6))
    vspec = pl.BlockSpec(memory_space=pltpu.MemorySpace.VMEM)
    # TODO(synk): for grids too large for VMEM, add an H-tiled grid with a
    # 1-row halo (index_map overlap) instead of this single-block call.
    return pl.pallas_call(
        kernel,
        out_shape=out_shape,
        in_specs=[vspec] * 6,
        out_specs=tuple(vspec for _ in range(6)),
        # Donate Min and the message buffers (the torch module mutates them
        # in place anyway); npot is read-only, Mout gets a fresh buffer.
        input_output_aliases={0: 0, 2: 1, 3: 2, 4: 3, 5: 4},
        compiler_params=pltpu.CompilerParams(
            vmem_limit_bytes=32 * 1024 * 1024),
    )(min_p, npot_p, d_p, u_p, r_p, l_p)


@functools.partial(jax.jit, static_argnames=("stay", "alpha", "num_iters"))
def grid_bp_forward(Min, npot, Md, Mu, Mr, Ml, *, stay=0.9, alpha=0.8,
                    num_iters=1):
    """GridBP forward (num_iters fused sweeps) in the PyTorch layout.

    Min, npot, Mout : (h, w, 2); Md, Mu : (h-1, w, 2); Mr, Ml : (h, w-1, 2).
    Returns (Min_fixed, Md_new, Mu_new, Mr_new, Ml_new, Mout).
    Layout conversion to the lane-dense padded form happens once here; for
    iterative use keep state padded/channel-first and raise num_iters.
    """
    h, w, _ = Min.shape
    dtype = Min.dtype
    hp = _round_up(h, 8)
    wp = _round_up(w, 128)

    to_chw = lambda a: jnp.transpose(a, (2, 0, 1))
    to_hwc = lambda a: jnp.transpose(a, (1, 2, 0))

    def fill(value):
        return jnp.full((2, hp, wp), value, dtype)

    min_p = fill(0.5).at[:, :h, :w].set(to_chw(Min))
    npot_p = fill(0.5).at[:, :h, :w].set(to_chw(npot))
    d_p = fill(1.0).at[:, 1:h, :w].set(to_chw(Md))       # incoming from above
    u_p = fill(1.0).at[:, :h - 1, :w].set(to_chw(Mu))    # incoming from below
    r_p = fill(1.0).at[:, :h, 1:w].set(to_chw(Mr))       # incoming from left
    l_p = fill(1.0).at[:, :h, :w - 1].set(to_chw(Ml))    # incoming from right

    minf, d_n, u_n, r_n, l_n, mout = _pallas_grid_bp(
        min_p, npot_p, d_p, u_p, r_p, l_p,
        stay=stay, alpha=alpha, h=h, w=w, num_iters=num_iters)

    return (to_hwc(minf[:, :h, :w]),
            to_hwc(d_n[:, 1:h, :w]),
            to_hwc(u_n[:, :h - 1, :w]),
            to_hwc(r_n[:, :h, 1:w]),
            to_hwc(l_n[:, :h, :w - 1]),
            to_hwc(mout[:, :h, :w]))


def reference_forward(Min, npot, Md, Mu, Mr, Ml, stay, alpha):
    """NumPy reference mirroring the PyTorch forward (H, W, 2 layout)."""
    Min = Min.copy()
    Md, Mu, Mr, Ml = Md.copy(), Mu.copy(), Mr.copy(), Ml.copy()
    h, w, _ = Min.shape
    epot = np.array([[stay, 1 - stay], [1 - stay, stay]], dtype=Min.dtype)

    S = np.sum(npot * Min, -1)
    Min[S == 0.0] = 0.5

    Md1 = npot[:-1] * Min[:-1]
    Md1[1:] *= Md[:-1]
    Md1[:, 1:] *= Mr[:-1]
    Md1[:, :-1] *= Ml[:-1]
    Md1 = np.einsum('ij,hwj->hwi', epot, Md1)

    Mu1 = npot[1:] * Min[1:]
    Mu1[:-1] *= Mu[1:]
    Mu1[:, 1:] *= Mr[1:]
    Mu1[:, :-1] *= Ml[1:]
    Mu1 = np.einsum('ji,hwj->hwi', epot, Mu1)

    Mr1 = npot[:, :-1] * Min[:, :-1]
    Mr1[:-1] *= Mu[:, :-1]
    Mr1[:, 1:] *= Mr[:, :-1]
    Mr1[1:] *= Md[:, :-1]
    Mr1 = np.einsum('ij,hwj->hwi', epot, Mr1)

    Ml1 = npot[:, 1:] * Min[:, 1:]
    Ml1[:-1] *= Mu[:, 1:]
    Ml1[:, :-1] *= Ml[:, 1:]
    Ml1[1:] *= Md[:, 1:]
    Ml1 = np.einsum('ji,hwj->hwi', epot, Ml1)

    Md1 /= Md1.sum(-1, keepdims=True)
    Mu1 /= Mu1.sum(-1, keepdims=True)
    Mr1 /= Mr1.sum(-1, keepdims=True)
    Ml1 /= Ml1.sum(-1, keepdims=True)

    Md_new = alpha * Md1 + (1 - alpha) * Md
    Mu_new = alpha * Mu1 + (1 - alpha) * Mu
    Mr_new = alpha * Mr1 + (1 - alpha) * Mr
    Ml_new = alpha * Ml1 + (1 - alpha) * Ml

    Mout = np.ones((h, w, 2), dtype=Min.dtype)
    Mout[1:] *= Md_new
    Mout[:-1] *= Mu_new
    Mout[:, 1:] *= Mr_new
    Mout[:, :-1] *= Ml_new
    Mout /= Mout.sum(-1, keepdims=True)
    return Min, Md_new, Mu_new, Mr_new, Ml_new, Mout


if __name__ == "__main__":
    h, w = 16, 16
    p, stay, alpha = 0.5, 0.9, 0.8

    key = jax.random.PRNGKey(0)
    Min = jax.random.uniform(key, (h, w, 2), dtype=jnp.float32,
                             minval=0.1, maxval=1.0)
    # Deterministic parameter / buffer init (as in GridBP.__init__):
    npot = jnp.tile(jnp.array([1.0 - p, p], dtype=jnp.float32), (h, w, 1))
    Md = jnp.full((h - 1, w, 2), 0.5, dtype=jnp.float32)
    Mu = jnp.full((h - 1, w, 2), 0.5, dtype=jnp.float32)
    Mr = jnp.full((h, w - 1, 2), 0.5, dtype=jnp.float32)
    Ml = jnp.full((h, w - 1, 2), 0.5, dtype=jnp.float32)

    # ---- single forward step ----
    outs = jax.block_until_ready(
        grid_bp_forward(Min, npot, Md, Mu, Mr, Ml,
                        stay=stay, alpha=alpha, num_iters=1))
    ref = reference_forward(np.asarray(Min), np.asarray(npot), np.asarray(Md),
                            np.asarray(Mu), np.asarray(Mr), np.asarray(Ml),
                            np.float32(stay), np.float32(alpha))
    for o, r in zip(outs, ref):
        np.testing.assert_allclose(np.asarray(o), r, rtol=5e-5, atol=1e-6)

    # ---- several sweeps fused inside one pallas_call ----
    n_sweeps = 6
    outs_n = jax.block_until_ready(
        grid_bp_forward(Min, npot, Md, Mu, Mr, Ml,
                        stay=stay, alpha=alpha, num_iters=n_sweeps))
    rMin, rMd, rMu = np.asarray(Min), np.asarray(Md), np.asarray(Mu)
    rMr, rMl, rnpot = np.asarray(Mr), np.asarray(Ml), np.asarray(npot)
    for _ in range(n_sweeps):
        rMin, rMd, rMu, rMr, rMl, rMout = reference_forward(
            rMin, rnpot, rMd, rMu, rMr, rMl,
            np.float32(stay), np.float32(alpha))
    ref_n = (rMin, rMd, rMu, rMr, rMl, rMout)
    for o, r in zip(outs_n, ref_n):
        np.testing.assert_allclose(np.asarray(o), r, rtol=5e-4, atol=1e-5)

    print("KERNEL_OK")
</pallas_src>

<mosaic_0001>
module attributes {stable_mosaic.version = 11 : i64} {
  func.func @_grid_bp_kernel(%arg0: memref<2x16x128xf32, #tpu.memory_space<vmem>>, %arg1: memref<2x16x128xf32, #tpu.memory_space<vmem>>, %arg2: memref<2x16x128xf32, #tpu.memory_space<vmem>>, %arg3: memref<2x16x128xf32, #tpu.memory_space<vmem>>, %arg4: memref<2x16x128xf32, #tpu.memory_space<vmem>>, %arg5: memref<2x16x128xf32, #tpu.memory_space<vmem>>, %arg6: memref<2x16x128xf32, #tpu.memory_space<vmem>>, %arg7: memref<2x16x128xf32, #tpu.memory_space<vmem>>, %arg8: memref<2x16x128xf32, #tpu.memory_space<vmem>>, %arg9: memref<2x16x128xf32, #tpu.memory_space<vmem>>, %arg10: memref<2x16x128xf32, #tpu.memory_space<vmem>>, %arg11: memref<2x16x128xf32, #tpu.memory_space<vmem>>) attributes {dimension_semantics = [], scalar_prefetch = 0 : i64, scratch_operands = 0 : i64, tpu.core_type = #tpu.core_type<tc>} {
    %c0 = arith.constant 0 : index
    %c0_0 = arith.constant 0 : index
    %c0_1 = arith.constant 0 : index
    %0 = vector.load %arg1[%c0, %c0_0, %c0_1] : memref<2x16x128xf32, #tpu.memory_space<vmem>>, vector<1x16x128xf32>
    %1 = vector.shape_cast %0 : vector<1x16x128xf32> to vector<16x128xf32>
    %c1 = arith.constant 1 : index
    %c0_2 = arith.constant 0 : index
    %c0_3 = arith.constant 0 : index
    %2 = vector.load %arg1[%c1, %c0_2, %c0_3] : memref<2x16x128xf32, #tpu.memory_space<vmem>>, vector<1x16x128xf32>
    %3 = vector.shape_cast %2 : vector<1x16x128xf32> to vector<16x128xf32>
    %c0_4 = arith.constant 0 : index
    %c0_5 = arith.constant 0 : index
    %c0_6 = arith.constant 0 : index
    %4 = vector.load %arg0[%c0_4, %c0_5, %c0_6] : memref<2x16x128xf32, #tpu.memory_space<vmem>>, vector<1x16x128xf32>
    %5 = vector.shape_cast %4 : vector<1x16x128xf32> to vector<16x128xf32>
    %c1_7 = arith.constant 1 : index
    %c0_8 = arith.constant 0 : index
    %c0_9 = arith.constant 0 : index
    %6 = vector.load %arg0[%c1_7, %c0_8, %c0_9] : memref<2x16x128xf32, #tpu.memory_space<vmem>>, vector<1x16x128xf32>
    %7 = vector.shape_cast %6 : vector<1x16x128xf32> to vector<16x128xf32>
    %8 = arith.mulf %1, %5 : vector<16x128xf32>
    %9 = arith.mulf %3, %7 : vector<16x128xf32>
    %10 = arith.addf %8, %9 : vector<16x128xf32>
    %cst = arith.constant 0.000000e+00 : f32
    %11 = vector.broadcast %cst : f32 to vector<16x128xf32>
    %12 = arith.cmpf oeq, %10, %11 : vector<16x128xf32>
    %cst_10 = arith.constant 5.000000e-01 : f32
    %13 = vector.broadcast %cst_10 : f32 to vector<16x128xf32>
    %14 = arith.select %12, %13, %5 : vector<16x128xi1>, vector<16x128xf32>
    %cst_11 = arith.constant 5.000000e-01 : f32
    %15 = vector.broadcast %cst_11 : f32 to vector<16x128xf32>
    %16 = arith.select %12, %15, %7 : vector<16x128xi1>, vector<16x128xf32>
    %c0_12 = arith.constant 0 : index
    %c0_13 = arith.constant 0 : index
    %c0_14 = arith.constant 0 : index
    %17 = vector.load %arg6[%c0_12, %c0_13, %c0_14] : memref<2x16x128xf32, #tpu.memory_space<vmem>>, vector<1x16x128xf32>
    %18 = vector.shape_cast %17 : vector<1x16x128xf32> to vector<16x128xf32>
    %19 = vector.shape_cast %14 : vector<16x128xf32> to vector<1x16x128xf32>
    tpu.vector_store %arg6[%c0_12, %c0_13, %c0_14], %19 {strides = array<i32>} : memref<2x16x128xf32, #tpu.memory_space<vmem>>, vector<1x16x128xf32>,
    %c1_15 = arith.constant 1 : index
    %c0_16 = arith.constant 0 : index
    %c0_17 = arith.constant 0 : index
    %20 = vector.load %arg6[%c1_15, %c0_16, %c0_17] : memref<2x16x128xf32, #tpu.memory_space<vmem>>, vector<1x16x128xf32>
    %21 = vector.shape_cast %20 : vector<1x16x128xf32> to vector<16x128xf32>
    %22 = vector.shape_cast %16 : vector<16x128xf32> to vector<1x16x128xf32>
    tpu.vector_store %arg6[%c1_15, %c0_16, %c0_17], %22 {strides = array<i32>} : memref<2x16x128xf32, #tpu.memory_space<vmem>>, vector<1x16x128xf32>,
    %23 = arith.mulf %1, %14 : vector<16x128xf32>
    %24 = arith.mulf %3, %16 : vector<16x128xf32>
    %25 = tpu.iota {dimensions = array<i32: 0>} : vector<16x128xi32>
    %26 = tpu.iota {dimensions = array<i32: 1>} : vector<16x128xi32>
    %c0_i32 = arith.constant 0 : i32
    %27 = vector.broadcast %c0_i32 : i32 to vector<16x128xi32>
    %28 = arith.cmpi eq, %25, %27 : vector<16x128xi32>
    %c15_i32 = arith.constant 15 : i32
    %29 = vector.broadcast %c15_i32 : i32 to vector<16x128xi32>
    %30 = arith.cmpi eq, %25, %29 : vector<16x128xi32>
    %c0_i32_18 = arith.constant 0 : i32
    %31 = vector.broadcast %c0_i32_18 : i32 to vector<16x128xi32>
    %32 = arith.cmpi eq, %26, %31 : vector<16x128xi32>
    %c15_i32_19 = arith.constant 15 : i32
    %33 = vector.broadcast %c15_i32_19 : i32 to vector<16x128xi32>
    %34 = arith.cmpi eq, %26, %33 : vector<16x128xi32>
    %cst_20 = arith.constant 1.000000e+00 : f32
    %35 = vector.broadcast %cst_20 : f32 to vector<1x128xf32>
    %cst_21 = arith.constant 1.000000e+00 : f32
    %36 = vector.broadcast %cst_21 : f32 to vector<16x1xf32>
    %c0_22 = arith.constant 0 : index
    %c0_23 = arith.constant 0 : index
    %c0_24 = arith.constant 0 : index
    %37 = vector.load %arg2[%c0_22, %c0_23, %c0_24] : memref<2x16x128xf32, #tpu.memory_space<vmem>>, vector<1x16x128xf32>
    %38 = vector.shape_cast %37 : vector<1x16x128xf32> to vector<16x128xf32>
    %c1_25 = arith.constant 1 : index
    %c0_26 = arith.constant 0 : index
    %c0_27 = arith.constant 0 : index
    %39 = vector.load %arg2[%c1_25, %c0_26, %c0_27] : memref<2x16x128xf32, #tpu.memory_space<vmem>>, vector<1x16x128xf32>
    %40 = vector.shape_cast %39 : vector<1x16x128xf32> to vector<16x128xf32>
    %c0_28 = arith.constant 0 : index
    %c0_29 = arith.constant 0 : index
    %c0_30 = arith.constant 0 : index
    %41 = vector.load %arg3[%c0_28, %c0_29, %c0_30] : memref<2x16x128xf32, #tpu.memory_space<vmem>>, vector<1x16x128xf32>
    %42 = vector.shape_cast %41 : vector<1x16x128xf32> to vector<16x128xf32>
    %c1_31 = arith.constant 1 : index
    %c0_32 = arith.constant 0 : index
    %c0_33 = arith.constant 0 : index
    %43 = vector.load %arg3[%c1_31, %c0_32, %c0_33] : memref<2x16x128xf32, #tpu.memory_space<vmem>>, vector<1x16x128xf32>
    %44 = vector.shape_cast %43 : vector<1x16x128xf32> to vector<16x128xf32>
    %c0_34 = arith.constant 0 : index
    %c0_35 = arith.constant 0 : index
    %c0_36 = arith.constant 0 : index
    %45 = vector.load %arg4[%c0_34, %c0_35, %c0_36] : memref<2x16x128xf32, #tpu.memory_space<vmem>>, vector<1x16x128xf32>
    %46 = vector.shape_cast %45 : vector<1x16x128xf32> to vector<16x128xf32>
    %c1_37 = arith.constant 1 : index
    %c0_38 = arith.constant 0 : index
    %c0_39 = arith.constant 0 : index
    %47 = vector.load %arg4[%c1_37, %c0_38, %c0_39] : memref<2x16x128xf32, #tpu.memory_space<vmem>>, vector<1x16x128xf32>
    %48 = vector.shape_cast %47 : vector<1x16x128xf32> to vector<16x128xf32>
    %c0_40 = arith.constant 0 : index
    %c0_41 = arith.constant 0 : index
    %c0_42 = arith.constant 0 : index
    %49 = vector.load %arg5[%c0_40, %c0_41, %c0_42] : memref<2x16x128xf32, #tpu.memory_space<vmem>>, vector<1x16x128xf32>
    %50 = vector.shape_cast %49 : vector<1x16x128xf32> to vector<16x128xf32>
    %c1_43 = arith.constant 1 : index
    %c0_44 = arith.constant 0 : index
    %c0_45 = arith.constant 0 : index
    %51 = vector.load %arg5[%c1_43, %c0_44, %c0_45] : memref<2x16x128xf32, #tpu.memory_space<vmem>>, vector<1x16x128xf32>
    %52 = vector.shape_cast %51 : vector<1x16x128xf32> to vector<16x128xf32>
    %53 = arith.mulf %46, %50 : vector<16x128xf32>
    %54 = arith.mulf %23, %53 : vector<16x128xf32>
    %55 = arith.mulf %48, %52 : vector<16x128xf32>
    %56 = arith.mulf %24, %55 : vector<16x128xf32>
    %57 = arith.mulf %42, %38 : vector<16x128xf32>
    %58 = arith.mulf %23, %57 : vector<16x128xf32>
    %59 = arith.mulf %44, %40 : vector<16x128xf32>
    %60 = arith.mulf %24, %59 : vector<16x128xf32>
    %61 = arith.mulf %54, %38 : vector<16x128xf32>
    %62 = arith.mulf %56, %40 : vector<16x128xf32>
    %63 = vector.extract_strided_slice %61 {offsets = [0, 0], sizes = [15, 128], strides = [1, 1]} : vector<16x128xf32> to vector<15x128xf32>
    %64 = tpu.concatenate %35, %63 in 0 : vector<1x128xf32>, vector<15x128xf32> -> vector<16x128xf32>
    %65 = vector.extract_strided_slice %62 {offsets = [0, 0], sizes = [15, 128], strides = [1, 1]} : vector<16x128xf32> to vector<15x128xf32>
    %66 = tpu.concatenate %35, %65 in 0 : vector<1x128xf32>, vector<15x128xf32> -> vector<16x128xf32>
    %cst_46 = arith.constant 0.899999976 : f32
    %67 = vector.broadcast %cst_46 : f32 to vector<16x128xf32>
    %68 = arith.mulf %67, %64 : vector<16x128xf32>
    %cst_47 = arith.constant 1.000000e-01 : f32
    %69 = vector.broadcast %cst_47 : f32 to vector<16x128xf32>
    %70 = arith.mulf %69, %66 : vector<16x128xf32>
    %71 = arith.addf %68, %70 : vector<16x128xf32>
    %cst_48 = arith.constant 1.000000e-01 : f32
    %72 = vector.broadcast %cst_48 : f32 to vector<16x128xf32>
    %73 = arith.mulf %72, %64 : vector<16x128xf32>
    %cst_49 = arith.constant 0.899999976 : f32
    %74 = vector.broadcast %cst_49 : f32 to vector<16x128xf32>
    %75 = arith.mulf %74, %66 : vector<16x128xf32>
    %76 = arith.addf %73, %75 : vector<16x128xf32>
    %77 = arith.addf %71, %76 : vector<16x128xf32>
    %cst_50 = arith.constant 8.000000e-01 : f32
    %78 = vector.broadcast %cst_50 : f32 to vector<16x128xf32>
    %79 = arith.divf %78, %77 : vector<16x128xf32>
    %80 = arith.mulf %71, %79 : vector<16x128xf32>
    %cst_51 = arith.constant 2.000000e-01 : f32
    %81 = vector.broadcast %cst_51 : f32 to vector<16x128xf32>
    %82 = arith.mulf %81, %38 : vector<16x128xf32>
    %83 = arith.addf %80, %82 : vector<16x128xf32>
    %84 = arith.mulf %76, %79 : vector<16x128xf32>
    %cst_52 = arith.constant 2.000000e-01 : f32
    %85 = vector.broadcast %cst_52 : f32 to vector<16x128xf32>
    %86 = arith.mulf %85, %40 : vector<16x128xf32>
    %87 = arith.addf %84, %86 : vector<16x128xf32>
    %cst_53 = arith.constant 1.000000e+00 : f32
    %88 = vector.broadcast %cst_53 : f32 to vector<16x128xf32>
    %89 = arith.select %28, %88, %83 : vector<16x128xi1>, vector<16x128xf32>
    %cst_54 = arith.constant 1.000000e+00 : f32
    %90 = vector.broadcast %cst_54 : f32 to vector<16x128xf32>
    %91 = arith.select %28, %90, %87 : vector<16x128xi1>, vector<16x128xf32>
    %92 = arith.mulf %54, %42 : vector<16x128xf32>
    %93 = arith.mulf %56, %44 : vector<16x128xf32>
    %94 = vector.extract_strided_slice %92 {offsets = [1, 0], sizes = [15, 128], strides = [1, 1]} : vector<16x128xf32> to vector<15x128xf32>
    %95 = tpu.concatenate %94, %35 in 0 : vector<15x128xf32>, vector<1x128xf32> -> vector<16x128xf32>
    %96 = vector.extract_strided_slice %93 {offsets = [1, 0], sizes = [15, 128], strides = [1, 1]} : vector<16x128xf32> to vector<15x128xf32>
    %97 = tpu.concatenate %96, %35 in 0 : vector<15x128xf32>, vector<1x128xf32> -> vector<16x128xf32>
    %cst_55 = arith.constant 0.899999976 : f32
    %98 = vector.broadcast %cst_55 : f32 to vector<16x128xf32>
    %99 = arith.mulf %98, %95 : vector<16x128xf32>
    %cst_56 = arith.constant 1.000000e-01 : f32
    %100 = vector.broadcast %cst_56 : f32 to vector<16x128xf32>
    %101 = arith.mulf %100, %97 : vector<16x128xf32>
    %102 = arith.addf %99, %101 : vector<16x128xf32>
    %cst_57 = arith.constant 1.000000e-01 : f32
    %103 = vector.broadcast %cst_57 : f32 to vector<16x128xf32>
    %104 = arith.mulf %103, %95 : vector<16x128xf32>
    %cst_58 = arith.constant 0.899999976 : f32
    %105 = vector.broadcast %cst_58 : f32 to vector<16x128xf32>
    %106 = arith.mulf %105, %97 : vector<16x128xf32>
    %107 = arith.addf %104, %106 : vector<16x128xf32>
    %108 = arith.addf %102, %107 : vector<16x128xf32>
    %cst_59 = arith.constant 8.000000e-01 : f32
    %109 = vector.broadcast %cst_59 : f32 to vector<16x128xf32>
    %110 = arith.divf %109, %108 : vector<16x128xf32>
    %111 = arith.mulf %102, %110 : vector<16x128xf32>
    %cst_60 = arith.constant 2.000000e-01 : f32
    %112 = vector.broadcast %cst_60 : f32 to vector<16x128xf32>
    %113 = arith.mulf %112, %42 : vector<16x128xf32>
    %114 = arith.addf %111, %113 : vector<16x128xf32>
    %115 = arith.mulf %107, %110 : vector<16x128xf32>
    %cst_61 = arith.constant 2.000000e-01 : f32
    %116 = vector.broadcast %cst_61 : f32 to vector<16x128xf32>
    %117 = arith.mulf %116, %44 : vector<16x128xf32>
    %118 = arith.addf %115, %117 : vector<16x128xf32>
    %cst_62 = arith.constant 1.000000e+00 : f32
    %119 = vector.broadcast %cst_62 : f32 to vector<16x128xf32>
    %120 = arith.select %30, %119, %114 : vector<16x128xi1>, vector<16x128xf32>
    %cst_63 = arith.constant 1.000000e+00 : f32
    %121 = vector.broadcast %cst_63 : f32 to vector<16x128xf32>
    %122 = arith.select %30, %121, %118 : vector<16x128xi1>, vector<16x128xf32>
    %123 = arith.mulf %58, %46 : vector<16x128xf32>
    %124 = arith.mulf %60, %48 : vector<16x128xf32>
    %125 = vector.extract_strided_slice %123 {offsets = [0, 0], sizes = [16, 127], strides = [1, 1]} : vector<16x128xf32> to vector<16x127xf32>
    %126 = tpu.concatenate %36, %125 in 1 : vector<16x1xf32>, vector<16x127xf32> -> vector<16x128xf32>
    %127 = vector.extract_strided_slice %124 {offsets = [0, 0], sizes = [16, 127], strides = [1, 1]} : vector<16x128xf32> to vector<16x127xf32>
    %128 = tpu.concatenate %36, %127 in 1 : vector<16x1xf32>, vector<16x127xf32> -> vector<16x128xf32>
    %cst_64 = arith.constant 0.899999976 : f32
    %129 = vector.broadcast %cst_64 : f32 to vector<16x128xf32>
    %130 = arith.mulf %129, %126 : vector<16x128xf32>
    %cst_65 = arith.constant 1.000000e-01 : f32
    %131 = vector.broadcast %cst_65 : f32 to vector<16x128xf32>
    %132 = arith.mulf %131, %128 : vector<16x128xf32>
    %133 = arith.addf %130, %132 : vector<16x128xf32>
    %cst_66 = arith.constant 1.000000e-01 : f32
    %134 = vector.broadcast %cst_66 : f32 to vector<16x128xf32>
    %135 = arith.mulf %134, %126 : vector<16x128xf32>
    %cst_67 = arith.constant 0.899999976 : f32
    %136 = vector.broadcast %cst_67 : f32 to vector<16x128xf32>
    %137 = arith.mulf %136, %128 : vector<16x128xf32>
    %138 = arith.addf %135, %137 : vector<16x128xf32>
    %139 = arith.addf %133, %138 : vector<16x128xf32>
    %cst_68 = arith.constant 8.000000e-01 : f32
    %140 = vector.broadcast %cst_68 : f32 to vector<16x128xf32>
    %141 = arith.divf %140, %139 : vector<16x128xf32>
    %142 = arith.mulf %133, %141 : vector<16x128xf32>
    %cst_69 = arith.constant 2.000000e-01 : f32
    %143 = vector.broadcast %cst_69 : f32 to vector<16x128xf32>
    %144 = arith.mulf %143, %46 : vector<16x128xf32>
    %145 = arith.addf %142, %144 : vector<16x128xf32>
    %146 = arith.mulf %138, %141 : vector<16x128xf32>
    %cst_70 = arith.constant 2.000000e-01 : f32
    %147 = vector.broadcast %cst_70 : f32 to vector<16x128xf32>
    %148 = arith.mulf %147, %48 : vector<16x128xf32>
    %149 = arith.addf %146, %148 : vector<16x128xf32>
    %cst_71 = arith.constant 1.000000e+00 : f32
    %150 = vector.broadcast %cst_71 : f32 to vector<16x128xf32>
    %151 = arith.select %32, %150, %145 : vector<16x128xi1>, vector<16x128xf32>
    %cst_72 = arith.constant 1.000000e+00 : f32
    %152 = vector.broadcast %cst_72 : f32 to vector<16x128xf32>
    %153 = arith.select %32, %152, %149 : vector<16x128xi1>, vector<16x128xf32>
    %154 = arith.mulf %58, %50 : vector<16x128xf32>
    %155 = arith.mulf %60, %52 : vector<16x128xf32>
    %156 = vector.extract_strided_slice %154 {offsets = [0, 1], sizes = [16, 127], strides = [1, 1]} : vector<16x128xf32> to vector<16x127xf32>
    %157 = tpu.concatenate %156, %36 in 1 : vector<16x127xf32>, vector<16x1xf32> -> vector<16x128xf32>
    %158 = vector.extract_strided_slice %155 {offsets = [0, 1], sizes = [16, 127], strides = [1, 1]} : vector<16x128xf32> to vector<16x127xf32>
    %159 = tpu.concatenate %158, %36 in 1 : vector<16x127xf32>, vector<16x1xf32> -> vector<16x128xf32>
    %cst_73 = arith.constant 0.899999976 : f32
    %160 = vector.broadcast %cst_73 : f32 to vector<16x128xf32>
    %161 = arith.mulf %160, %157 : vector<16x128xf32>
    %cst_74 = arith.constant 1.000000e-01 : f32
    %162 = vector.broadcast %cst_74 : f32 to vector<16x128xf32>
    %163 = arith.mulf %162, %159 : vector<16x128xf32>
    %164 = arith.addf %161, %163 : vector<16x128xf32>
    %cst_75 = arith.constant 1.000000e-01 : f32
    %165 = vector.broadcast %cst_75 : f32 to vector<16x128xf32>
    %166 = arith.mulf %165, %157 : vector<16x128xf32>
    %cst_76 = arith.constant 0.899999976 : f32
    %167 = vector.broadcast %cst_76 : f32 to vector<16x128xf32>
    %168 = arith.mulf %167, %159 : vector<16x128xf32>
    %169 = arith.addf %166, %168 : vector<16x128xf32>
    %170 = arith.addf %164, %169 : vector<16x128xf32>
    %cst_77 = arith.constant 8.000000e-01 : f32
    %171 = vector.broadcast %cst_77 : f32 to vector<16x128xf32>
    %172 = arith.divf %171, %170 : vector<16x128xf32>
    %173 = arith.mulf %164, %172 : vector<16x128xf32>
    %cst_78 = arith.constant 2.000000e-01 : f32
    %174 = vector.broadcast %cst_78 : f32 to vector<16x128xf32>
    %175 = arith.mulf %174, %50 : vector<16x128xf32>
    %176 = arith.addf %173, %175 : vector<16x128xf32>
    %177 = arith.mulf %169, %172 : vector<16x128xf32>
    %cst_79 = arith.constant 2.000000e-01 : f32
    %178 = vector.broadcast %cst_79 : f32 to vector<16x128xf32>
    %179 = arith.mulf %178, %52 : vector<16x128xf32>
    %180 = arith.addf %177, %179 : vector<16x128xf32>
    %cst_80 = arith.constant 1.000000e+00 : f32
    %181 = vector.broadcast %cst_80 : f32 to vector<16x128xf32>
    %182 = arith.select %34, %181, %176 : vector<16x128xi1>, vector<16x128xf32>
    %cst_81 = arith.constant 1.000000e+00 : f32
    %183 = vector.broadcast %cst_81 : f32 to vector<16x128xf32>
    %184 = arith.select %34, %183, %180 : vector<16x128xi1>, vector<16x128xf32>
    %c0_82 = arith.constant 0 : index
    %c0_83 = arith.constant 0 : index
    %c0_84 = arith.constant 0 : index
    %185 = vector.load %arg7[%c0_82, %c0_83, %c0_84] : memref<2x16x128xf32, #tpu.memory_space<vmem>>, vector<1x16x128xf32>
    %186 = vector.shape_cast %185 : vector<1x16x128xf32> to vector<16x128xf32>
    %187 = vector.shape_cast %89 : vector<16x128xf32> to vector<1x16x128xf32>
    tpu.vector_store %arg7[%c0_82, %c0_83, %c0_84], %187 {strides = array<i32>} : memref<2x16x128xf32, #tpu.memory_space<vmem>>, vector<1x16x128xf32>,
    %c1_85 = arith.constant 1 : index
    %c0_86 = arith.constant 0 : index
    %c0_87 = arith.constant 0 : index
    %188 = vector.load %arg7[%c1_85, %c0_86, %c0_87] : memref<2x16x128xf32, #tpu.memory_space<vmem>>, vector<1x16x128xf32>
    %189 = vector.shape_cast %188 : vector<1x16x128xf32> to vector<16x128xf32>
    %190 = vector.shape_cast %91 : vector<16x128xf32> to vector<1x16x128xf32>
    tpu.vector_store %arg7[%c1_85, %c0_86, %c0_87], %190 {strides = array<i32>} : memref<2x16x128xf32, #tpu.memory_space<vmem>>, vector<1x16x128xf32>,
    %c0_88 = arith.constant 0 : index
    %c0_89 = arith.constant 0 : index
    %c0_90 = arith.constant 0 : index
    %191 = vector.load %arg8[%c0_88, %c0_89, %c0_90] : memref<2x16x128xf32, #tpu.memory_space<vmem>>, vector<1x16x128xf32>
    %192 = vector.shape_cast %191 : vector<1x16x128xf32> to vector<16x128xf32>
    %193 = vector.shape_cast %120 : vector<16x128xf32> to vector<1x16x128xf32>
    tpu.vector_store %arg8[%c0_88, %c0_89, %c0_90], %193 {strides = array<i32>} : memref<2x16x128xf32, #tpu.memory_space<vmem>>, vector<1x16x128xf32>,
    %c1_91 = arith.constant 1 : index
    %c0_92 = arith.constant 0 : index
    %c0_93 = arith.constant 0 : index
    %194 = vector.load %arg8[%c1_91, %c0_92, %c0_93] : memref<2x16x128xf32, #tpu.memory_space<vmem>>, vector<1x16x128xf32>
    %195 = vector.shape_cast %194 : vector<1x16x128xf32> to vector<16x128xf32>
    %196 = vector.shape_cast %122 : vector<16x128xf32> to vector<1x16x128xf32>
    tpu.vector_store %arg8[%c1_91, %c0_92, %c0_93], %196 {strides = array<i32>} : memref<2x16x128xf32, #tpu.memory_space<vmem>>, vector<1x16x128xf32>,
    %c0_94 = arith.constant 0 : index
    %c0_95 = arith.constant 0 : index
    %c0_96 = arith.constant 0 : index
    %197 = vector.load %arg9[%c0_94, %c0_95, %c0_96] : memref<2x16x128xf32, #tpu.memory_space<vmem>>, vector<1x16x128xf32>
    %198 = vector.shape_cast %197 : vector<1x16x128xf32> to vector<16x128xf32>
    %199 = vector.shape_cast %151 : vector<16x128xf32> to vector<1x16x128xf32>
    tpu.vector_store %arg9[%c0_94, %c0_95, %c0_96], %199 {strides = array<i32>} : memref<2x16x128xf32, #tpu.memory_space<vmem>>, vector<1x16x128xf32>,
    %c1_97 = arith.constant 1 : index
    %c0_98 = arith.constant 0 : index
    %c0_99 = arith.constant 0 : index
    %200 = vector.load %arg9[%c1_97, %c0_98, %c0_99] : memref<2x16x128xf32, #tpu.memory_space<vmem>>, vector<1x16x128xf32>
    %201 = vector.shape_cast %200 : vector<1x16x128xf32> to vector<16x128xf32>
    %202 = vector.shape_cast %153 : vector<16x128xf32> to vector<1x16x128xf32>
    tpu.vector_store %arg9[%c1_97, %c0_98, %c0_99], %202 {strides = array<i32>} : memref<2x16x128xf32, #tpu.memory_space<vmem>>, vector<1x16x128xf32>,
    %c0_100 = arith.constant 0 : index
    %c0_101 = arith.constant 0 : index
    %c0_102 = arith.constant 0 : index
    %203 = vector.load %arg10[%c0_100, %c0_101, %c0_102] : memref<2x16x128xf32, #tpu.memory_space<vmem>>, vector<1x16x128xf32>
    %204 = vector.shape_cast %203 : vector<1x16x128xf32> to vector<16x128xf32>
    %205 = vector.shape_cast %182 : vector<16x128xf32> to vector<1x16x128xf32>
    tpu.vector_store %arg10[%c0_100, %c0_101, %c0_102], %205 {strides = array<i32>} : memref<2x16x128xf32, #tpu.memory_space<vmem>>, vector<1x16x128xf32>,
    %c1_103 = arith.constant 1 : index
    %c0_104 = arith.constant 0 : index
    %c0_105 = arith.constant 0 : index
    %206 = vector.load %arg10[%c1_103, %c0_104, %c0_105] : memref<2x16x128xf32, #tpu.memory_space<vmem>>, vector<1x16x128xf32>
    %207 = vector.shape_cast %206 : vector<1x16x128xf32> to vector<16x128xf32>
    %208 = vector.shape_cast %184 : vector<16x128xf32> to vector<1x16x128xf32>
    tpu.vector_store %arg10[%c1_103, %c0_104, %c0_105], %208 {strides = array<i32>} : memref<2x16x128xf32, #tpu.memory_space<vmem>>, vector<1x16x128xf32>,
    %209 = arith.mulf %89, %120 : vector<16x128xf32>
    %210 = arith.mulf %151, %182 : vector<16x128xf32>
    %211 = arith.mulf %209, %210 : vector<16x128xf32>
    %212 = arith.mulf %91, %122 : vector<16x128xf32>
    %213 = arith.mulf %153, %184 : vector<16x128xf32>
    %214 = arith.mulf %212, %213 : vector<16x128xf32>
    %215 = arith.addf %211, %214 : vector<16x128xf32>
    %cst_106 = arith.constant 1.000000e+00 : f32
    %216 = vector.broadcast %cst_106 : f32 to vector<16x128xf32>
    %217 = arith.divf %216, %215 : vector<16x128xf32>
    %218 = arith.mulf %211, %217 : vector<16x128xf32>
    %c0_107 = arith.constant 0 : index
    %c0_108 = arith.constant 0 : index
    %c0_109 = arith.constant 0 : index
    %219 = vector.load %arg11[%c0_107, %c0_108, %c0_109] : memref<2x16x128xf32, #tpu.memory_space<vmem>>, vector<1x16x128xf32>
    %220 = vector.shape_cast %219 : vector<1x16x128xf32> to vector<16x128xf32>
    %221 = vector.shape_cast %218 : vector<16x128xf32> to vector<1x16x128xf32>
    tpu.vector_store %arg11[%c0_107, %c0_108, %c0_109], %221 {strides = array<i32>} : memref<2x16x128xf32, #tpu.memory_space<vmem>>, vector<1x16x128xf32>,
    %222 = arith.mulf %214, %217 : vector<16x128xf32>
    %c1_110 = arith.constant 1 : index
    %c0_111 = arith.constant 0 : index
    %c0_112 = arith.constant 0 : index
    %223 = vector.load %arg11[%c1_110, %c0_111, %c0_112] : memref<2x16x128xf32, #tpu.memory_space<vmem>>, vector<1x16x128xf32>
    %224 = vector.shape_cast %223 : vector<1x16x128xf32> to vector<16x128xf32>
    %225 = vector.shape_cast %222 : vector<16x128xf32> to vector<1x16x128xf32>
    tpu.vector_store %arg11[%c1_110, %c0_111, %c0_112], %225 {strides = array<i32>} : memref<2x16x128xf32, #tpu.memory_space<vmem>>, vector<1x16x128xf32>,
    return
  }
}

</mosaic_0001>

<llo_original>
// kernel: grid_bp_forward.1
$region0: #{grid_bp_forward.1}
  #allocation0 [shape = 'u32[]', space=smem, size = 0x4, offset = 0x4, fixed_abs, tag = 'smem constant byte address 0x4 - core index']
  #allocation1 [shape = 'u32[72,128]{1,0:T(1,128)}', space=vmem, size = 0x9000, scoped, tag = 'internal scratch']
  %s0 = inlined_call_operand.vmem [shape: f32[2,16,128], index: 0, kind: input, shape index: {}, may-alias: {0,6}]
  %s1 = inlined_call_operand.vmem [shape: f32[2,16,128], index: 1, kind: input, shape index: {}]
  %s2 = inlined_call_operand.vmem [shape: f32[2,16,128], index: 2, kind: input, shape index: {}, may-alias: {2,7}]
  %s3 = inlined_call_operand.vmem [shape: f32[2,16,128], index: 3, kind: input, shape index: {}, may-alias: {3,8}]
  %s4 = inlined_call_operand.vmem [shape: f32[2,16,128], index: 4, kind: input, shape index: {}, may-alias: {4,9}]
  %s5 = inlined_call_operand.vmem [shape: f32[2,16,128], index: 5, kind: input, shape index: {}, may-alias: {5,10}]
  %s6 = inlined_call_operand.vmem [shape: f32[2,16,128], index: 6, kind: output, shape index: {0}, may-alias: {0,6}]
  %s7 = inlined_call_operand.vmem [shape: f32[2,16,128], index: 7, kind: output, shape index: {1}, may-alias: {2,7}]
  %s8 = inlined_call_operand.vmem [shape: f32[2,16,128], index: 8, kind: output, shape index: {2}, may-alias: {3,8}]
  %s9 = inlined_call_operand.vmem [shape: f32[2,16,128], index: 9, kind: output, shape index: {3}, may-alias: {4,9}]
  %s10 = inlined_call_operand.vmem [shape: f32[2,16,128], index: 10, kind: output, shape index: {4}, may-alias: {5,10}]
  %s11 = inlined_call_operand.vmem [shape: f32[2,16,128], index: 11, kind: output, shape index: {5}]
  %12 = xla_tuple %s6, %s7, %s8, %s9, %s10, %s11
  %s13 = sld [smem:[#allocation0]]
  $region74: #{grid_bp_forward.1} parent=0
    _
  %s15 = ssub.s32 1, %s13
  %s16 = scalar_select 0, %s15, %s13
  // Predicated region
  $region2: #{grid_bp_forward.1} parent=0 // pred_check
    _
  $region3: #{grid_bp_forward.1} parent=0 // pred_check_branch
    %18 = sbr.rel (0) target = $region5
  $region4: #{grid_bp_forward.1} parent=0 // pred_region
    _
  $region5: #{grid_bp_forward.1} parent=0 // pred_fallthru
    _
  // Predicated region
  $region6: #{grid_bp_forward.1} parent=0 // pred_check
    _
  $region7: #{grid_bp_forward.1} parent=0 // pred_check_branch
    %20 = sbr.rel (0) target = $region9
  $region8: #{grid_bp_forward.1} parent=0 // pred_region
    _
  $region9: #{grid_bp_forward.1} parent=0 // pred_fallthru
    _
  // Predicated region
  $region10: #{grid_bp_forward.1} parent=0 // pred_check
    _
  $region11: #{grid_bp_forward.1} parent=0 // pred_check_branch
    %22 = sbr.rel (0) target = $region13
  $region12: #{grid_bp_forward.1} parent=0 // pred_region
    _
  $region13: #{grid_bp_forward.1} parent=0 // pred_fallthru
    _
  // Predicated region
  $region14: #{grid_bp_forward.1} parent=0 // pred_check
    _
  $region15: #{grid_bp_forward.1} parent=0 // pred_check_branch
    %24 = sbr.rel (0) target = $region17
  $region16: #{grid_bp_forward.1} parent=0 // pred_region
    _
  $region17: #{grid_bp_forward.1} parent=0 // pred_fallthru
    _
  // Predicated region
  $region18: #{grid_bp_forward.1} parent=0 // pred_check
    _
  $region19: #{grid_bp_forward.1} parent=0 // pred_check_branch
    %26 = sbr.rel (0) target = $region21
  $region20: #{grid_bp_forward.1} parent=0 // pred_region
    _
  $region21: #{grid_bp_forward.1} parent=0 // pred_fallthru
    _
  // Predicated region
  $region22: #{grid_bp_forward.1} parent=0 // pred_check
    _
  $region23: #{grid_bp_forward.1} parent=0 // pred_check_branch
    %28 = sbr.rel (0) target = $region25
  $region24: #{grid_bp_forward.1} parent=0 // pred_region
    _
  $region25: #{grid_bp_forward.1} parent=0 // pred_fallthru
    _
  %v29 = vld [vmem:[%s1] sm:$0xff]
  %v30 = vld [vmem:[%s1 + $0x8] sm:$0xff]
  %s31 = scalar_lea.vmem %s1, 16
  %v32 = vld [vmem:[%s31] sm:$0xff]
  %v33 = vld [vmem:[%s31 + $0x8] sm:$0xff]
  %v34 = vld [vmem:[%s0] sm:$0xff]
  %v35 = vld [vmem:[%s0 + $0x8] sm:$0xff]
  %s36 = scalar_lea.vmem %s0, 16
  %v37 = vld [vmem:[%s36] sm:$0xff]
  %v38 = vld [vmem:[%s36 + $0x8] sm:$0xff]
  %v39 = vmul.f32 %v29, %v34
  %v40 = vmul.f32 %v30, %v35
  %v41 = vmul.f32 %v32, %v37
  %v42 = vmul.f32 %v33, %v38
  %v43 = vadd.f32 %v39, %v41
  %v44 = vadd.f32 %v40, %v42
  %vm45 = vcmp.eq.f32.partialorder %v43, 0.0
  %vm46 = vcmp.eq.f32.partialorder %v44, 0.0
  %v47 = vsel %vm45, 0.5, %v34
  %v48 = vsel %vm46, 0.5, %v35
  %v49 = vsel %vm45, 0.5, %v37
  %v50 = vsel %vm46, 0.5, %v38
  %51 = vst [vmem:[%s6] sm:$0xff] %v47
  %52 = vst [vmem:[%s6 + $0x8] sm:$0xff] %v48
  %s53 = scalar_lea.vmem %s6, 16
  %54 = vst [vmem:[%s53] sm:$0xff] %v49
  %55 = vst [vmem:[%s53 + $0x8] sm:$0xff] %v50
  %v56 = vmul.f32 %v29, %v47
  %v57 = vmul.f32 %v30, %v48
  %v58 = vmul.f32 %v32, %v49
  %v59 = vmul.f32 %v33, %v50
  %v60 = vlaneseq
  %v61 = vshrl.u32 %v60, 7
  %v62 = vadd.s32 %v61, 8
  %v63 = vlaneseq
  %v64 = vand.u32 %v63, 127
  %vm65 = vcmp.eq.s32.totalorder %v61, 0
  %vm66 = vcmp.eq.s32.totalorder %v62, 0
  %vm67 = vcmp.eq.s32.totalorder %v61, 15
  %vm68 = vcmp.eq.s32.totalorder %v62, 15
  %vm69 = vcmp.eq.s32.totalorder %v64, 0
  %vm70 = vcmp.eq.s32.totalorder %v64, 15
  %v71 = vld [vmem:[%s2] sm:$0xff]
  %v72 = vld [vmem:[%s2 + $0x8] sm:$0xff]
  %s73 = scalar_lea.vmem %s2, 16
  %v74 = vld [vmem:[%s73] sm:$0xff]
  %v75 = vld [vmem:[%s73 + $0x8] sm:$0xff]
  %v76 = vld [vmem:[%s3] sm:$0xff]
  %v77 = vld [vmem:[%s3 + $0x8] sm:$0xff]
  %s78 = scalar_lea.vmem %s3, 16
  %v79 = vld [vmem:[%s78] sm:$0xff]
  %v80 = vld [vmem:[%s78 + $0x8] sm:$0xff]
  %v81 = vld [vmem:[%s4] sm:$0xff]
  %v82 = vld [vmem:[%s4 + $0x8] sm:$0xff]
  %s83 = scalar_lea.vmem %s4, 16
  %v84 = vld [vmem:[%s83] sm:$0xff]
  %v85 = vld [vmem:[%s83 + $0x8] sm:$0xff]
  %v86 = vld [vmem:[%s5] sm:$0xff]
  %v87 = vld [vmem:[%s5 + $0x8] sm:$0xff]
  %s88 = scalar_lea.vmem %s5, 16
  %v89 = vld [vmem:[%s88] sm:$0xff]
  %v90 = vld [vmem:[%s88 + $0x8] sm:$0xff]
  %v91 = vmul.f32 %v81, %v86
  %v92 = vmul.f32 %v82, %v87
  %v93 = vmul.f32 %v56, %v91
  %v94 = vmul.f32 %v57, %v92
  %v95 = vmul.f32 %v84, %v89
  %v96 = vmul.f32 %v85, %v90
  %v97 = vmul.f32 %v58, %v95
  %v98 = vmul.f32 %v59, %v96
  %v99 = vmul.f32 %v76, %v71
  %v100 = vmul.f32 %v77, %v72
  %v101 = vmul.f32 %v56, %v99
  %v102 = vmul.f32 %v57, %v100
  %v103 = vmul.f32 %v79, %v74
  %v104 = vmul.f32 %v80, %v75
  %v105 = vmul.f32 %v58, %v103
  %v106 = vmul.f32 %v59, %v104
  %v107 = vmul.f32 %v93, %v71
  %v108 = vmul.f32 %v94, %v72
  %v109 = vmul.f32 %v97, %v74
  %v110 = vmul.f32 %v98, %v75
  %vm113 = vcmask 1040384
  %v114 = vrot.slane %v107, 7
  %v115 = vrot.slane %v108, 7
  %v116 = vsel %vm113, %v114, %v115
  %v119 = vsel %vm113, 1.0, %v114
  %v122 = vrot.slane %v109, 7
  %v123 = vrot.slane %v110, 7
  %v124 = vsel %vm113, %v122, %v123
  %v127 = vsel %vm113, 1.0, %v122
  %v128 = vmul.f32 %v119, 0.9
  %v129 = vmul.f32 %v116, 0.9
  %v130 = vmul.f32 %v127, 0.1
  %v131 = vmul.f32 %v124, 0.1
  %v132 = vadd.f32 %v128, %v130
  %v133 = vadd.f32 %v129, %v131
  %v134 = vmul.f32 %v119, 0.1
  %v135 = vmul.f32 %v116, 0.1
  %v136 = vmul.f32 %v127, 0.9
  %v137 = vmul.f32 %v124, 0.9
  %v138 = vadd.f32 %v134, %v136
  %v139 = vadd.f32 %v135, %v137
  %v140 = vadd.f32 %v132, %v138
  %v141 = vadd.f32 %v133, %v139
  %v142 = vrcp.pop %v140
  %v143 = vmul.f32 %v140, %v142
  %v144 = vsub.f32 1.0, %v143
  %v145 = vmul.f32 %v142, %v144
  %v146 = vadd.f32 %v142, %v145
  %vm147 = vweird.f32 %v140
  %vm148 = vweird.f32 %v142
  %vm149 = vmor %vm147, %vm148
  %v150 = vsel %vm149, %v142, %v146
  %v151 = vand.u32 2147483647, %v140
  %vm152 = vcmp.eq.f32.partialorder %v151, 8.507059e+37
  %v153 = vand.u32 %v140, 2147483648
  %v154 = vor.u32 1.1754944e-38, %v153
  %v155 = vsel %vm152, %v154, %v150
  %v156 = vmul.f32 0.8, %v155
  %v157 = vrcp.pop %v141
  %v158 = vmul.f32 %v141, %v157
  %v159 = vsub.f32 1.0, %v158
  %v160 = vmul.f32 %v157, %v159
  %v161 = vadd.f32 %v157, %v160
  %vm162 = vweird.f32 %v141
  %vm163 = vweird.f32 %v157
  %vm164 = vmor %vm162, %vm163
  %v165 = vsel %vm164, %v157, %v161
  %v166 = vand.u32 2147483647, %v141
  %vm167 = vcmp.eq.f32.partialorder %v166, 8.507059e+37
  %v168 = vand.u32 %v141, 2147483648
  %v169 = vor.u32 1.1754944e-38, %v168
  %v170 = vsel %vm167, %v169, %v165
  %v171 = vmul.f32 0.8, %v170
  %v172 = vmul.f32 %v132, %v156
  %v173 = vmul.f32 %v133, %v171
  %v174 = vmul.f32 %v71, 0.2
  %v175 = vmul.f32 %v72, 0.2
  %v176 = vadd.f32 %v172, %v174
  %v177 = vadd.f32 %v173, %v175
  %v178 = vmul.f32 %v138, %v156
  %v179 = vmul.f32 %v139, %v171
  %v180 = vmul.f32 %v74, 0.2
  %v181 = vmul.f32 %v75, 0.2
  %v182 = vadd.f32 %v178, %v180
  %v183 = vadd.f32 %v179, %v181
  %v184 = vsel %vm65, 1.0, %v176
  %v185 = vsel %vm66, 1.0, %v177
  %v186 = vsel %vm65, 1.0, %v182
  %v187 = vsel %vm66, 1.0, %v183
  %v188 = vmul.f32 %v93, %v76
  %v189 = vmul.f32 %v94, %v77
  %v190 = vmul.f32 %v97, %v79
  %v191 = vmul.f32 %v98, %v80
  %vm194 = vcmask 1046528
  %v195 = vrot.slane %v188, 1
  %v196 = vrot.slane %v189, 1
  %v197 = vsel %vm194, %v195, %v196
  %v200 = vsel %vm194, %v196, 1.0
  %v203 = vrot.slane %v190, 1
  %v204 = vrot.slane %v191, 1
  %v205 = vsel %vm194, %v203, %v204
  %v208 = vsel %vm194, %v204, 1.0
  %v209 = vmul.f32 %v197, 0.9
  %v210 = vmul.f32 %v200, 0.9
  %v211 = vmul.f32 %v205, 0.1
  %v212 = vmul.f32 %v208, 0.1
  %v213 = vadd.f32 %v209, %v211
  %v214 = vadd.f32 %v210, %v212
  %v215 = vmul.f32 %v197, 0.1
  %v216 = vmul.f32 %v200, 0.1
  %v217 = vmul.f32 %v205, 0.9
  %v218 = vmul.f32 %v208, 0.9
  %v219 = vadd.f32 %v215, %v217
  %v220 = vadd.f32 %v216, %v218
  %v221 = vadd.f32 %v213, %v219
  %v222 = vadd.f32 %v214, %v220
  %v223 = vrcp.pop %v221
  %v224 = vmul.f32 %v221, %v223
  %v225 = vsub.f32 1.0, %v224
  %v226 = vmul.f32 %v223, %v225
  %v227 = vadd.f32 %v223, %v226
  %vm228 = vweird.f32 %v221
  %vm229 = vweird.f32 %v223
  %vm230 = vmor %vm228, %vm229
  %v231 = vsel %vm230, %v223, %v227
  %v232 = vand.u32 2147483647, %v221
  %vm233 = vcmp.eq.f32.partialorder %v232, 8.507059e+37
  %v234 = vand.u32 %v221, 2147483648
  %v235 = vor.u32 1.1754944e-38, %v234
  %v236 = vsel %vm233, %v235, %v231
  %v237 = vmul.f32 0.8, %v236
  %v238 = vrcp.pop %v222
  %v239 = vmul.f32 %v222, %v238
  %v240 = vsub.f32 1.0, %v239
  %v241 = vmul.f32 %v238, %v240
  %v242 = vadd.f32 %v238, %v241
  %vm243 = vweird.f32 %v222
  %vm244 = vweird.f32 %v238
  %vm245 = vmor %vm243, %vm244
  %v246 = vsel %vm245, %v238, %v242
  %v247 = vand.u32 2147483647, %v222
  %vm248 = vcmp.eq.f32.partialorder %v247, 8.507059e+37
  %v249 = vand.u32 %v222, 2147483648
  %v250 = vor.u32 1.1754944e-38, %v249
  %v251 = vsel %vm248, %v250, %v246
  %v252 = vmul.f32 0.8, %v251
  %v253 = vmul.f32 %v213, %v237
  %v254 = vmul.f32 %v214, %v252
  %v255 = vmul.f32 %v76, 0.2
  %v256 = vmul.f32 %v77, 0.2
  %v257 = vadd.f32 %v253, %v255
  %v258 = vadd.f32 %v254, %v256
  %v259 = vmul.f32 %v219, %v237
  %v260 = vmul.f32 %v220, %v252
  %v261 = vmul.f32 %v79, 0.2
  %v262 = vmul.f32 %v80, 0.2
  %v263 = vadd.f32 %v259, %v261
  %v264 = vadd.f32 %v260, %v262
  %v265 = vsel %vm67, 1.0, %v257
  %v266 = vsel %vm68, 1.0, %v258
  %v267 = vsel %vm67, 1.0, %v263
  %v268 = vsel %vm68, 1.0, %v264
  %v269 = vmul.f32 %v101, %v81
  %v270 = vmul.f32 %v102, %v82
  %v271 = vmul.f32 %v105, %v84
  %v272 = vmul.f32 %v106, %v85
  %275 = vrot.lane.b32.xlu0 %v269, 1
  %v276 = vpop.permute.xlu0 %275
  %277 = vrot.lane.b32.xlu0 %v270, 1
  %v278 = vpop.permute.xlu0 %277
  %vm281 = vcmask 7168
  %v282 = vsel %vm281, 1.0, %v276
  %v283 = vsel %vm281, 1.0, %v278
  %286 = vrot.lane.b32.xlu0 %v271, 1
  %v287 = vpop.permute.xlu0 %286
  %288 = vrot.lane.b32.xlu0 %v272, 1
  %v289 = vpop.permute.xlu0 %288
  %v292 = vsel %vm281, 1.0, %v287
  %v293 = vsel %vm281, 1.0, %v289
  %v294 = vmul.f32 %v282, 0.9
  %v295 = vmul.f32 %v283, 0.9
  %v296 = vmul.f32 %v292, 0.1
  %v297 = vmul.f32 %v293, 0.1
  %v298 = vadd.f32 %v294, %v296
  %v299 = vadd.f32 %v295, %v297
  %v300 = vmul.f32 %v282, 0.1
  %v301 = vmul.f32 %v283, 0.1
  %v302 = vmul.f32 %v292, 0.9
  %v303 = vmul.f32 %v293, 0.9
  %v304 = vadd.f32 %v300, %v302
  %v305 = vadd.f32 %v301, %v303
  %v306 = vadd.f32 %v298, %v304
  %v307 = vadd.f32 %v299, %v305
  %v308 = vrcp.pop %v306
  %v309 = vmul.f32 %v306, %v308
  %v310 = vsub.f32 1.0, %v309
  %v311 = vmul.f32 %v308, %v310
  %v312 = vadd.f32 %v308, %v311
  %vm313 = vweird.f32 %v306
  %vm314 = vweird.f32 %v308
  %vm315 = vmor %vm313, %vm314
  %v316 = vsel %vm315, %v308, %v312
  %v317 = vand.u32 2147483647, %v306
  %vm318 = vcmp.eq.f32.partialorder %v317, 8.507059e+37
  %v319 = vand.u32 %v306, 2147483648
  %v320 = vor.u32 1.1754944e-38, %v319
  %v321 = vsel %vm318, %v320, %v316
  %v322 = vmul.f32 0.8, %v321
  %v323 = vrcp.pop %v307
  %v324 = vmul.f32 %v307, %v323
  %v325 = vsub.f32 1.0, %v324
  %v326 = vmul.f32 %v323, %v325
  %v327 = vadd.f32 %v323, %v326
  %vm328 = vweird.f32 %v307
  %vm329 = vweird.f32 %v323
  %vm330 = vmor %vm328, %vm329
  %v331 = vsel %vm330, %v323, %v327
  %v332 = vand.u32 2147483647, %v307
  %vm333 = vcmp.eq.f32.partialorder %v332, 8.507059e+37
  %v334 = vand.u32 %v307, 2147483648
  %v335 = vor.u32 1.1754944e-38, %v334
  %v336 = vsel %vm333, %v335, %v331
  %v337 = vmul.f32 0.8, %v336
  %v338 = vmul.f32 %v298, %v322
  %v339 = vmul.f32 %v299, %v337
  %v340 = vmul.f32 %v81, 0.2
  %v341 = vmul.f32 %v82, 0.2
  %v342 = vadd.f32 %v338, %v340
  %v343 = vadd.f32 %v339, %v341
  %v344 = vmul.f32 %v304, %v322
  %v345 = vmul.f32 %v305, %v337
  %v346 = vmul.f32 %v84, 0.2
  %v347 = vmul.f32 %v85, 0.2
  %v348 = vadd.f32 %v344, %v346
  %v349 = vadd.f32 %v345, %v347
  %v350 = vsel %vm69, 1.0, %v342
  %v351 = vsel %vm69, 1.0, %v343
  %v352 = vsel %vm69, 1.0, %v348
  %v353 = vsel %vm69, 1.0, %v349
  %v354 = vmul.f32 %v101, %v86
  %v355 = vmul.f32 %v102, %v87
  %v356 = vmul.f32 %v105, %v89
  %v357 = vmul.f32 %v106, %v90
  %360 = vrot.lane.b32.xlu0 %v354, 127
  %v361 = vpop.permute.xlu0 %360
  %362 = vrot.lane.b32.xlu0 %v355, 127
  %v363 = vpop.permute.xlu0 %362
  %vm366 = vcmask 1039360
  %v367 = vsel %vm366, %v361, 1.0
  %v368 = vsel %vm366, %v363, 1.0
  %371 = vrot.lane.b32.xlu0 %v356, 127
  %v372 = vpop.permute.xlu0 %371
  %373 = vrot.lane.b32.xlu0 %v357, 127
  %v374 = vpop.permute.xlu0 %373
  %v377 = vsel %vm366, %v372, 1.0
  %v378 = vsel %vm366, %v374, 1.0
  %v379 = vmul.f32 %v367, 0.9
  %v380 = vmul.f32 %v368, 0.9
  %v381 = vmul.f32 %v377, 0.1
  %v382 = vmul.f32 %v378, 0.1
  %v383 = vadd.f32 %v379, %v381
  %v384 = vadd.f32 %v380, %v382
  %v385 = vmul.f32 %v367, 0.1
  %v386 = vmul.f32 %v368, 0.1
  %v387 = vmul.f32 %v377, 0.9
  %v388 = vmul.f32 %v378, 0.9
  %v389 = vadd.f32 %v385, %v387
  %v390 = vadd.f32 %v386, %v388
  %v391 = vadd.f32 %v383, %v389
  %v392 = vadd.f32 %v384, %v390
  %v393 = vrcp.pop %v391
  %v394 = vmul.f32 %v391, %v393
  %v395 = vsub.f32 1.0, %v394
  %v396 = vmul.f32 %v393, %v395
  %v397 = vadd.f32 %v393, %v396
  %vm398 = vweird.f32 %v391
  %vm399 = vweird.f32 %v393
  %vm400 = vmor %vm398, %vm399
  %v401 = vsel %vm400, %v393, %v397
  %v402 = vand.u32 2147483647, %v391
  %vm403 = vcmp.eq.f32.partialorder %v402, 8.507059e+37
  %v404 = vand.u32 %v391, 2147483648
  %v405 = vor.u32 1.1754944e-38, %v404
  %v406 = vsel %vm403, %v405, %v401
  %v407 = vmul.f32 0.8, %v406
  %v408 = vrcp.pop %v392
  %v409 = vmul.f32 %v392, %v408
  %v410 = vsub.f32 1.0, %v409
  %v411 = vmul.f32 %v408, %v410
  %v412 = vadd.f32 %v408, %v411
  %vm413 = vweird.f32 %v392
  %vm414 = vweird.f32 %v408
  %vm415 = vmor %vm413, %vm414
  %v416 = vsel %vm415, %v408, %v412
  %v417 = vand.u32 2147483647, %v392
  %vm418 = vcmp.eq.f32.partialorder %v417, 8.507059e+37
  %v419 = vand.u32 %v392, 2147483648
  %v420 = vor.u32 1.1754944e-38, %v419
  %v421 = vsel %vm418, %v420, %v416
  %v422 = vmul.f32 0.8, %v421
  %v423 = vmul.f32 %v383, %v407
  %v424 = vmul.f32 %v384, %v422
  %v425 = vmul.f32 %v86, 0.2
  %v426 = vmul.f32 %v87, 0.2
  %v427 = vadd.f32 %v423, %v425
  %v428 = vadd.f32 %v424, %v426
  %v429 = vmul.f32 %v389, %v407
  %v430 = vmul.f32 %v390, %v422
  %v431 = vmul.f32 %v89, 0.2
  %v432 = vmul.f32 %v90, 0.2
  %v433 = vadd.f32 %v429, %v431
  %v434 = vadd.f32 %v430, %v432
  %v435 = vsel %vm70, 1.0, %v427
  %v436 = vsel %vm70, 1.0, %v428
  %v437 = vsel %vm70, 1.0, %v433
  %v438 = vsel %vm70, 1.0, %v434
  %439 = vst [vmem:[%s7] sm:$0xff] %v184
  %440 = vst [vmem:[%s7 + $0x8] sm:$0xff] %v185
  %s441 = scalar_lea.vmem %s7, 16
  %442 = vst [vmem:[%s441] sm:$0xff] %v186
  %443 = vst [vmem:[%s441 + $0x8] sm:$0xff] %v187
  %444 = vst [vmem:[%s8] sm:$0xff] %v265
  %445 = vst [vmem:[%s8 + $0x8] sm:$0xff] %v266
  %s446 = scalar_lea.vmem %s8, 16
  %447 = vst [vmem:[%s446] sm:$0xff] %v267
  %448 = vst [vmem:[%s446 + $0x8] sm:$0xff] %v268
  %449 = vst [vmem:[%s9] sm:$0xff] %v350
  %450 = vst [vmem:[%s9 + $0x8] sm:$0xff] %v351
  %s451 = scalar_lea.vmem %s9, 16
  %452 = vst [vmem:[%s451] sm:$0xff] %v352
  %453 = vst [vmem:[%s451 + $0x8] sm:$0xff] %v353
  %454 = vst [vmem:[%s10] sm:$0xff] %v435
  %455 = vst [vmem:[%s10 + $0x8] sm:$0xff] %v436
  %s456 = scalar_lea.vmem %s10, 16
  %457 = vst [vmem:[%s456] sm:$0xff] %v437
  %458 = vst [vmem:[%s456 + $0x8] sm:$0xff] %v438
  %v459 = vmul.f32 %v184, %v265
  %v460 = vmul.f32 %v185, %v266
  %v461 = vmul.f32 %v350, %v435
  %v462 = vmul.f32 %v351, %v436
  %v463 = vmul.f32 %v459, %v461
  %v464 = vmul.f32 %v460, %v462
  %v465 = vmul.f32 %v186, %v267
  %v466 = vmul.f32 %v187, %v268
  %v467 = vmul.f32 %v352, %v437
  %v468 = vmul.f32 %v353, %v438
  %v469 = vmul.f32 %v465, %v467
  %v470 = vmul.f32 %v466, %v468
  %v471 = vadd.f32 %v463, %v469
  %v472 = vadd.f32 %v464, %v470
  %v473 = vrcp.pop %v471
  %v474 = vmul.f32 %v471, %v473
  %v475 = vsub.f32 1.0, %v474
  %v476 = vmul.f32 %v473, %v475
  %v477 = vadd.f32 %v473, %v476
  %vm478 = vweird.f32 %v471
  %vm479 = vweird.f32 %v473
  %vm480 = vmor %vm478, %vm479
  %v481 = vsel %vm480, %v473, %v477
  %v482 = vand.u32 2147483647, %v471
  %vm483 = vcmp.eq.f32.partialorder %v482, 8.507059e+37
  %v484 = vand.u32 %v471, 2147483648
  %v485 = vor.u32 1.1754944e-38, %v484
  %v486 = vsel %vm483, %v485, %v481
  %v487 = vmul.f32 1.0, %v486
  %v488 = vrcp.pop %v472
  %v489 = vmul.f32 %v472, %v488
  %v490 = vsub.f32 1.0, %v489
  %v491 = vmul.f32 %v488, %v490
  %v492 = vadd.f32 %v488, %v491
  %vm493 = vweird.f32 %v472
  %vm494 = vweird.f32 %v488
  %vm495 = vmor %vm493, %vm494
  %v496 = vsel %vm495, %v488, %v492
  %v497 = vand.u32 2147483647, %v472
  %vm498 = vcmp.eq.f32.partialorder %v497, 8.507059e+37
  %v499 = vand.u32 %v472, 2147483648
  %v500 = vor.u32 1.1754944e-38, %v499
  %v501 = vsel %vm498, %v500, %v496
  %v502 = vmul.f32 1.0, %v501
  %v503 = vmul.f32 %v463, %v487
  %v504 = vmul.f32 %v464, %v502
  %505 = vst [vmem:[%s11] sm:$0xff] %v503
  %506 = vst [vmem:[%s11 + $0x8] sm:$0xff] %v504
  %v507 = vmul.f32 %v469, %v487
  %v508 = vmul.f32 %v470, %v502
  %s509 = scalar_lea.vmem %s11, 16
  %510 = vst [vmem:[%s509] sm:$0xff] %v507
  %511 = vst [vmem:[%s509 + $0x8] sm:$0xff] %v508
  // Predicated region
  $region26: #{grid_bp_forward.1} parent=0 // pred_check
    _
  $region27: #{grid_bp_forward.1} parent=0 // pred_check_branch
    %513 = sbr.rel (0) target = $region29
  $region28: #{grid_bp_forward.1} parent=0 // pred_region
    _
  $region29: #{grid_bp_forward.1} parent=0 // pred_fallthru
    _
  // Predicated region
  $region30: #{grid_bp_forward.1} parent=0 // pred_check
    _
  $region31: #{grid_bp_forward.1} parent=0 // pred_check_branch
    %515 = sbr.rel (0) target = $region33
  $region32: #{grid_bp_forward.1} parent=0 // pred_region
    _
  $region33: #{grid_bp_forward.1} parent=0 // pred_fallthru
    _
  // Predicated region
  $region34: #{grid_bp_forward.1} parent=0 // pred_check
    _
  $region35: #{grid_bp_forward.1} parent=0 // pred_check_branch
    %517 = sbr.rel (0) target = $region37
  $region36: #{grid_bp_forward.1} parent=0 // pred_region
    _
  $region37: #{grid_bp_forward.1} parent=0 // pred_fallthru
    _
  // Predicated region
  $region38: #{grid_bp_forward.1} parent=0 // pred_check
    _
  $region39: #{grid_bp_forward.1} parent=0 // pred_check_branch
    %519 = sbr.rel (0) target = $region41
  $region40: #{grid_bp_forward.1} parent=0 // pred_region
    _
  $region41: #{grid_bp_forward.1} parent=0 // pred_fallthru
    _
  // Predicated region
  $region42: #{grid_bp_forward.1} parent=0 // pred_check
    _
  $region43: #{grid_bp_forward.1} parent=0 // pred_check_branch
    %521 = sbr.rel (0) target = $region45
  $region44: #{grid_bp_forward.1} parent=0 // pred_region
    _
  $region45: #{grid_bp_forward.1} parent=0 // pred_fallthru
    _
  // Predicated region
  $region46: #{grid_bp_forward.1} parent=0 // pred_check
    _
  $region47: #{grid_bp_forward.1} parent=0 // pred_check_branch
    %523 = sbr.rel (0) target = $region49
  $region48: #{grid_bp_forward.1} parent=0 // pred_region
    _
  $region49: #{grid_bp_forward.1} parent=0 // pred_fallthru
    _
  // Predicated region
  $region50: #{grid_bp_forward.1} parent=0 // pred_check
    _
  $region51: #{grid_bp_forward.1} parent=0 // pred_check_branch
    %525 = sbr.rel (0) target = $region53
  $region52: #{grid_bp_forward.1} parent=0 // pred_region
    _
  $region53: #{grid_bp_forward.1} parent=0 // pred_fallthru
    _
  // Predicated region
  $region54: #{grid_bp_forward.1} parent=0 // pred_check
    _
  $region55: #{grid_bp_forward.1} parent=0 // pred_check_branch
    %527 = sbr.rel (0) target = $region57
  $region56: #{grid_bp_forward.1} parent=0 // pred_region
    _
  $region57: #{grid_bp_forward.1} parent=0 // pred_fallthru
    _
  // Predicated region
  $region58: #{grid_bp_forward.1} parent=0 // pred_check
    _
  $region59: #{grid_bp_forward.1} parent=0 // pred_check_branch
    %529 = sbr.rel (0) target = $region61
  $region60: #{grid_bp_forward.1} parent=0 // pred_region
    _
  $region61: #{grid_bp_forward.1} parent=0 // pred_fallthru
    _
  // Predicated region
  $region62: #{grid_bp_forward.1} parent=0 // pred_check
    _
  $region63: #{grid_bp_forward.1} parent=0 // pred_check_branch
    %531 = sbr.rel (0) target = $region65
  $region64: #{grid_bp_forward.1} parent=0 // pred_region
    _
  $region65: #{grid_bp_forward.1} parent=0 // pred_fallthru
    _
  // Predicated region
  $region66: #{grid_bp_forward.1} parent=0 // pred_check
    _
  $region67: #{grid_bp_forward.1} parent=0 // pred_check_branch
    %533 = sbr.rel (0) target = $region69
  $region68: #{grid_bp_forward.1} parent=0 // pred_region
    _
  $region69: #{grid_bp_forward.1} parent=0 // pred_fallthru
    _
  // Predicated region
  $region70: #{grid_bp_forward.1} parent=0 // pred_check
    _
  $region71: #{grid_bp_forward.1} parent=0 // pred_check_branch
    %535 = sbr.rel (0) target = $region73
  $region72: #{grid_bp_forward.1} parent=0 // pred_region
    _
  $region73: #{grid_bp_forward.1} parent=0 // pred_fallthru
    _

</llo_original>
